<compile_context>
chip_gen: v7x
topology: tpu7x:2x2x1
jax: 0.10.0
libtpu: 0.0.40
codegen_flags: <defaults>
</compile_context>

<pallas_src>
from functools import partial

import jax
import jax.numpy as jnp
from jax import lax
from jax.experimental import pallas as pl
from jax.experimental.pallas import tpu as pltpu


def _round_up(x, m):
    return ((x + m - 1) // m) * m


# ------------------------------- Pallas kernel -------------------------------

def _drifting_kernel(xq_ref, xk_ref, fmask_ref, out_ref, *, tq, s_valid, eps):
    """One (batch, q-tile) step of the pair-wise cosine-similarity sum.

    xq_ref:    [1, TQ,    D] f32  query time-rows of this batch element
    xk_ref:    [1, S_pad, D] f32  all time-rows of this batch element
    fmask_ref: [1, 1,     D] i8   per-batch region (feature) mask
    out_ref:   [1, 1, 8, 128] f32 partial sum, broadcast over the tile (lane-dense)
    """
    qi = pl.program_id(1)

    fm = fmask_ref[0].astype(jnp.float32)                  # [1, D]

    def normalize(v):
        # Mask invalid features, then L2-normalize each row with the PyTorch-style
        # clamp:  1 / max(||v||, eps)  ==  rsqrt(max(||v||^2, eps^2)).
        vm = v * fm
        sq = jnp.sum(vm * vm, axis=-1, keepdims=True)
        inv = lax.rsqrt(jnp.maximum(sq, eps * eps))
        return (vm * inv).astype(jnp.bfloat16)             # bf16 rows for the MXU

    q = normalize(xq_ref[0])                               # [TQ,    D] bf16
    k = normalize(xk_ref[0])                               # [S_pad, D] bf16

    # All-pairs cosine similarities for this q tile (MXU, f32 accumulation).
    g = lax.dot_general(q, k, (((1,), (1,)), ((), ())),
                        preferred_element_type=jnp.float32)  # [TQ, S_pad] f32

    # Strict upper triangle in *global* time indices (t2 > t1); drop padded rows/cols.
    tq_n, sp = g.shape
    row = qi * tq + lax.broadcasted_iota(jnp.int32, (tq_n, sp), 0)
    col = lax.broadcasted_iota(jnp.int32, (tq_n, sp), 1)
    valid = (col > row) & (col < s_valid) & (row < s_valid)

    per_row = jnp.sum(jnp.where(valid, g, 0.0), axis=1, keepdims=True)   # [TQ, 1]
    total = jnp.sum(per_row, axis=0, keepdims=True)                      # [1, 1]

    # Lane-dense partial-sum tile (reduced by a trivial follow-up op in the wrapper).
    out_ref[0, 0] = jnp.broadcast_to(total, (8, 128))


# --------------------------------- wrapper -----------------------------------

def drifting_loss(fix_outputs, region_mask, *, beta, tq_default=256):
    """fix_outputs: [B, S, D] float, region_mask: [B, D] bool. Returns scalar loss."""
    B, S, D = fix_outputs.shape
    count = B * S * (S - 1) // 2

    # Sublane-aligned time tiling: TQ multiple of 8, S padded to a multiple of TQ.
    s_aligned = _round_up(S, 8)
    tq = min(tq_default, s_aligned)
    s_pad = _round_up(s_aligned, tq)
    nq = s_pad // tq

    x = fix_outputs.astype(jnp.float32)
    if s_pad != S:
        # Zero time-padding: zero rows normalize to zero vectors -> contribute 0.
        x = jnp.pad(x, ((0, 0), (0, s_pad - S), (0, 0)))

    fmask = region_mask.astype(jnp.int8)[:, None, :]            # [B, 1, D] int8

    partials = pl.pallas_call(
        partial(_drifting_kernel, tq=tq, s_valid=S, eps=1e-8),
        out_shape=jax.ShapeDtypeStruct((B, nq, 8, 128), jnp.float32),
        grid_spec=pltpu.PrefetchScalarGridSpec(
            num_scalar_prefetch=0,
            grid=(B, nq),
            in_specs=[
                pl.BlockSpec((1, tq, D), lambda b, q: (b, q, 0)),      # query tile
                pl.BlockSpec((1, s_pad, D), lambda b, q: (b, 0, 0)),   # full keys (per b)
                pl.BlockSpec((1, 1, D), lambda b, q: (b, 0, 0)),       # region mask
            ],
            out_specs=pl.BlockSpec((1, 1, 8, 128), lambda b, q: (b, q, 0, 0)),
        ),
        compiler_params=pltpu.CompilerParams(
            dimension_semantics=("parallel", "parallel"),
            vmem_limit_bytes=32 * 1024 * 1024,
        ),
        cost_estimate=pl.CostEstimate(
            flops=2 * B * nq * tq * s_pad * D,
            transcendentals=B * nq * (s_pad + tq),
            bytes_accessed=4 * B * s_pad * D            # full-key blocks (once per b)
            + 4 * B * nq * tq * D                       # query tiles
            + B * D                                     # int8 mask
            + 4 * B * nq * 8 * 128,                     # partial-sum tiles
        ),
    )(x, x, fmask)

    # Tiny scalar epilogue in plain JAX (keeps the kernel output lane-dense / parallel).
    total = jnp.sum(partials[:, :, 0, 0])
    avg = total / count
    return -jnp.log(1.0 - 0.5 * (avg + 1.0)) * beta


# ----------------------------------- main -------------------------------------

if __name__ == "__main__":
    B, S, D = 2, 8, 32
    beta = 0.1

    key = jax.random.PRNGKey(0)
    kx, km = jax.random.split(key)
    fix_outputs = jax.random.normal(kx, (B, S, D), jnp.float32)
    region_mask = jax.random.bernoulli(km, 0.5, (B, D))
    region_mask = region_mask.at[:, 0].set(True)   # keep at least one valid feature

    fwd = jax.jit(partial(drifting_loss, beta=beta))
    loss = fwd(fix_outputs, region_mask)
    jax.block_until_ready(loss)

    # Pure-JAX f32 reference (vectorized form of the PyTorch triple loop).
    def ref(x, m):
        mm = m.astype(jnp.float32)[:, None, :]
        xm = x.astype(jnp.float32) * mm
        n = jnp.maximum(jnp.sqrt(jnp.sum(xm * xm, axis=-1, keepdims=True)), 1e-8)
        xn = xm / n
        g = jnp.einsum('bsd,btd->bst', xn, xn)
        tri = jnp.triu(jnp.ones((S, S), jnp.float32), k=1)
        total = jnp.sum(g * tri[None])
        avg = total / (B * S * (S - 1) / 2)
        return -jnp.log(1.0 - 0.5 * (avg + 1.0)) * beta

    expected = ref(fix_outputs, region_mask)

    assert loss.shape == ()
    assert bool(jnp.isfinite(loss))
    # Loose tolerance: the Gram matmul uses bf16 inputs (f32 accumulation).
    assert bool(jnp.allclose(loss, expected, rtol=5e-2, atol=5e-3)), (loss, expected)
    print("KERNEL_OK")
</pallas_src>

<mosaic_0001>
module attributes {stable_mosaic.version = 11 : i64} {
  func.func @_drifting_kernel(%arg0: i32, %arg1: i32, %arg2: memref<1x8x32xf32, #tpu.memory_space<vmem>>, %arg3: memref<1x8x32xf32, #tpu.memory_space<vmem>>, %arg4: memref<1x1x32xi8, #tpu.memory_space<vmem>>, %arg5: memref<1x1x8x128xf32, #tpu.memory_space<vmem>>) attributes {dimension_semantics = [#tpu.dimension_semantics<parallel>, #tpu.dimension_semantics<parallel>], iteration_bounds = array<i64: 2, 1>, scalar_prefetch = 0 : i64, scratch_operands = 0 : i64, tpu.core_type = #tpu.core_type<tc>, window_params = [{transform_indices = @transform_0, window_bounds = array<i64: 1, 8, 32>}, {transform_indices = @transform_1, window_bounds = array<i64: 1, 8, 32>}, {transform_indices = @transform_2, window_bounds = array<i64: 1, 1, 32>}, {transform_indices = @transform_3, window_bounds = array<i64: 1, 1, 8, 128>}]} {
    %c0 = arith.constant 0 : index
    %c0_0 = arith.constant 0 : index
    %c0_1 = arith.constant 0 : index
    %0 = vector.load %arg4[%c0, %c0_0, %c0_1] : memref<1x1x32xi8, #tpu.memory_space<vmem>>, vector<1x1x32xi8>
    %1 = vector.shape_cast %0 : vector<1x1x32xi8> to vector<1x32xi8>
    %2 = arith.sitofp %1 : vector<1x32xi8> to vector<1x32xf32>
    %c0_2 = arith.constant 0 : index
    %c0_3 = arith.constant 0 : index
    %c0_4 = arith.constant 0 : index
    %3 = vector.load %arg2[%c0_2, %c0_3, %c0_4] : memref<1x8x32xf32, #tpu.memory_space<vmem>>, vector<1x8x32xf32>
    %4 = vector.shape_cast %3 : vector<1x8x32xf32> to vector<8x32xf32>
    %5 = vector.broadcast %2 : vector<1x32xf32> to vector<8x32xf32>
    %6 = arith.mulf %4, %5 : vector<8x32xf32>
    %7 = arith.mulf %6, %6 : vector<8x32xf32>
    %cst = arith.constant dense<0.000000e+00> : vector<8xf32>
    %8 = vector.multi_reduction <add>, %7, %cst [1] : vector<8x32xf32> to vector<8xf32>
    %9 = vector.shape_cast %8 : vector<8xf32> to vector<8x1xf32>
    %cst_5 = arith.constant 1.000000e-16 : f32
    %10 = vector.broadcast %cst_5 : f32 to vector<8x1xf32>
    %11 = arith.maximumf %9, %10 : vector<8x1xf32>
    %12 = math.rsqrt %11 : vector<8x1xf32>
    %13 = vector.broadcast %12 : vector<8x1xf32> to vector<8x32xf32>
    %14 = arith.mulf %6, %13 : vector<8x32xf32>
    %15 = arith.truncf %14 : vector<8x32xf32> to vector<8x32xbf16>
    %c0_6 = arith.constant 0 : index
    %c0_7 = arith.constant 0 : index
    %c0_8 = arith.constant 0 : index
    %16 = vector.load %arg3[%c0_6, %c0_7, %c0_8] : memref<1x8x32xf32, #tpu.memory_space<vmem>>, vector<1x8x32xf32>
    %17 = vector.shape_cast %16 : vector<1x8x32xf32> to vector<8x32xf32>
    %18 = vector.broadcast %2 : vector<1x32xf32> to vector<8x32xf32>
    %19 = arith.mulf %17, %18 : vector<8x32xf32>
    %20 = arith.mulf %19, %19 : vector<8x32xf32>
    %cst_9 = arith.constant dense<0.000000e+00> : vector<8xf32>
    %21 = vector.multi_reduction <add>, %20, %cst_9 [1] : vector<8x32xf32> to vector<8xf32>
    %22 = vector.shape_cast %21 : vector<8xf32> to vector<8x1xf32>
    %cst_10 = arith.constant 1.000000e-16 : f32
    %23 = vector.broadcast %cst_10 : f32 to vector<8x1xf32>
    %24 = arith.maximumf %22, %23 : vector<8x1xf32>
    %25 = math.rsqrt %24 : vector<8x1xf32>
    %26 = vector.broadcast %25 : vector<8x1xf32> to vector<8x32xf32>
    %27 = arith.mulf %19, %26 : vector<8x32xf32>
    %28 = arith.truncf %27 : vector<8x32xf32> to vector<8x32xbf16>
    %cst_11 = arith.constant dense<0.000000e+00> : vector<8x8xf32>
    %29 = tpu.matmul %15, %28, %cst_11 {dimension_numbers = #tpu.dot_dimension_numbers<[1], [1], [0], [0], [0, 0, 1, 0], [], []>} : vector<8x32xbf16>, vector<8x32xbf16>, vector<8x8xf32> -> vector<8x8xf32>
    %c8_i32 = arith.constant 8 : i32
    %30 = arith.muli %arg1, %c8_i32 : i32
    %31 = tpu.iota {dimensions = array<i32: 0>} : vector<8x8xi32>
    %32 = vector.broadcast %30 : i32 to vector<8x8xi32>
    %33 = arith.addi %32, %31 : vector<8x8xi32>
    %34 = tpu.iota {dimensions = array<i32: 1>} : vector<8x8xi32>
    %35 = arith.cmpi sgt, %34, %33 : vector<8x8xi32>
    %c8_i32_12 = arith.constant 8 : i32
    %36 = vector.broadcast %c8_i32_12 : i32 to vector<8x8xi32>
    %37 = arith.cmpi slt, %34, %36 : vector<8x8xi32>
    %38 = arith.andi %35, %37 : vector<8x8xi1>
    %c8_i32_13 = arith.constant 8 : i32
    %39 = vector.broadcast %c8_i32_13 : i32 to vector<8x8xi32>
    %40 = arith.cmpi slt, %33, %39 : vector<8x8xi32>
    %41 = arith.andi %38, %40 : vector<8x8xi1>
    %cst_14 = arith.constant 0.000000e+00 : f32
    %42 = vector.broadcast %cst_14 : f32 to vector<8x8xf32>
    %43 = arith.select %41, %29, %42 : vector<8x8xi1>, vector<8x8xf32>
    %cst_15 = arith.constant dense<0.000000e+00> : vector<8xf32>
    %44 = vector.multi_reduction <add>, %43, %cst_15 [1] : vector<8x8xf32> to vector<8xf32>
    %45 = vector.shape_cast %44 : vector<8xf32> to vector<8x1xf32>
    %cst_16 = arith.constant dense<0.000000e+00> : vector<1xf32>
    %46 = vector.multi_reduction <add>, %45, %cst_16 [0] : vector<8x1xf32> to vector<1xf32>
    %47 = vector.shape_cast %46 : vector<1xf32> to vector<1x1xf32>
    %48 = vector.shape_cast %47 : vector<1x1xf32> to vector<1x1xf32>
    %49 = vector.broadcast %48 : vector<1x1xf32> to vector<8x128xf32>
    %c0_17 = arith.constant 0 : index
    %c0_18 = arith.constant 0 : index
    %c0_19 = arith.constant 0 : index
    %c0_20 = arith.constant 0 : index
    %50 = vector.load %arg5[%c0_17, %c0_18, %c0_19, %c0_20] : memref<1x1x8x128xf32, #tpu.memory_space<vmem>>, vector<1x1x8x128xf32>
    %51 = vector.shape_cast %50 : vector<1x1x8x128xf32> to vector<8x128xf32>
    %52 = vector.shape_cast %49 : vector<8x128xf32> to vector<1x1x8x128xf32>
    tpu.vector_store %arg5[%c0_17, %c0_18, %c0_19, %c0_20], %52 {strides = array<i32>} : memref<1x1x8x128xf32, #tpu.memory_space<vmem>>, vector<1x1x8x128xf32>,
    return
  }
  func.func @transform_0(%arg0: i32, %arg1: i32) -> (i32, i32, i32) {
    %c0_i32 = arith.constant 0 : i32
    %c0_i32_0 = arith.constant 0 : i32
    return %arg0, %arg1, %c0_i32 : i32, i32, i32
  }
  func.func @transform_1(%arg0: i32, %arg1: i32) -> (i32, i32, i32) {
    %c0_i32 = arith.constant 0 : i32
    %c0_i32_0 = arith.constant 0 : i32
    %c0_i32_1 = arith.constant 0 : i32
    return %arg0, %c0_i32, %c0_i32_0 : i32, i32, i32
  }
  func.func @transform_2(%arg0: i32, %arg1: i32) -> (i32, i32, i32) {
    %c0_i32 = arith.constant 0 : i32
    %c0_i32_0 = arith.constant 0 : i32
    %c0_i32_1 = arith.constant 0 : i32
    return %arg0, %c0_i32, %c0_i32_0 : i32, i32, i32
  }
  func.func @transform_3(%arg0: i32, %arg1: i32) -> (i32, i32, i32, i32) {
    %c0_i32 = arith.constant 0 : i32
    %c0_i32_0 = arith.constant 0 : i32
    %c0_i32_1 = arith.constant 0 : i32
    return %arg0, %arg1, %c0_i32, %c0_i32_0 : i32, i32, i32, i32
  }
}

</mosaic_0001>

<llo_original>
// kernel: drifting_loss.1
$region0: #{drifting_loss.1}
  #allocation0 [shape = 'u32[]', space=smem, size = 0x4, offset = 0x4, fixed_abs, tag = 'smem constant byte address 0x4 - core index']
  #allocation1 [shape = 'u32[144,128]{1,0:T(1,128)}', space=vmem, size = 0x12000, scoped, tag = 'internal scratch']
  %s0 = inlined_call_operand.hbm [shape: f32[2,8,32], index: 0, kind: input, shape index: {}, may-alias: {0,1}]
  %s1 = inlined_call_operand.hbm [shape: f32[2,8,32], index: 1, kind: input, shape index: {}, may-alias: {0,1}]
  %s2 = inlined_call_operand.vmem [shape: s8[2,1,32], index: 2, kind: input, shape index: {}]
  %s3 = inlined_call_operand.vmem [shape: f32[2,1,8,128], index: 3, kind: output, shape index: {}]
  %s4 = sld [smem:[#allocation0]]
  $region53: #{drifting_loss.1} parent=0
    _
  %s6 = ssub.s32 1, %s4
  %s7 = scalar_select 0, %s6, %s4
  $region1: #{drifting_loss.1} parent=0
    #allocation2 [shape = 'u8[8192]{0}', space=vmem, size = 0x2000, scoped, tag = 'input window, operand 0']
    #allocation3 [shape = 's32[2]{0}', space=sflag, size = 0x8, scoped, tag = 'scoped memory for drifting_loss.1']
    #allocation4 [shape = 'u8[8192]{0}', space=vmem, size = 0x2000, scoped, tag = 'input window, operand 1']
    #allocation5 [shape = 's32[2]{0}', space=sflag, size = 0x8, scoped, tag = 'scoped memory for drifting_loss.1']
    %8 = vsyncpa [#allocation3], 0
    %s9 = scalar_lea.sflag [#allocation3], 1
    %10 = vsyncpa %s9, 0
    %11 = vsyncpa [#allocation5], 0
    %s12 = scalar_lea.sflag [#allocation5], 1
    %13 = vsyncpa %s12, 0
    loop: start=0, step=1, limit=4
    $region2: #{drifting_loss.1} parent=1 // loop_pre_header
      _
    $region3: #{drifting_loss.1} parent=1 // loop_header
      %s15 = sphi 0, %s19
      %p16 = scmp.ge.s32.totalorder %s15, 4
      %s22 = sphi 0, %s34
      %s23 = sphi 0, %s30
      %s24 = sphi 0, %s22
      %s25 = sphi 0, %s23
      %s26 = sphi 0, %s24
      %s27 = sphi 0, %s25
      %s39 = sphi 0, %s41
      %s42 = sphi 0, %s39
      %s43 = sphi 0, %s42
      %s59 = sphi 0, %s43
      %s65 = sphi 0, %s67
      %s68 = sphi 0, %s65
      %s69 = sphi 0, %s68
      %s85 = sphi 0, %s69
      %s91 = sphi 0, %s93
      %s94 = sphi 0, %s91
      %s95 = sphi 0, %s94
      %s111 = sphi 0, %s95
      %s119 = sphi 0, %s121
      %s122 = sphi 0, %s119
      %s123 = sphi 0, %s122
      %s139 = sphi 0, %s123
    $region4: #{drifting_loss.1} parent=1 // loop_header_branch
      %18 = sbr.rel (%p16) target = $region8
    $region5: #{drifting_loss.1} parent=1 // loop_body
      %s20 = ssub.s32 %s15, 1
      %s21 = ssub.s32 %s15, 2
      %s28 = sadd.s32 1, %s23
      %p29 = scmp.ge.s32.totalorder %s28, 1
      %s30 = scalar_select %p29, 0, %s28
      %s31 = sadd.s32 1, %s22
      %s32 = scalar_select %p29, %s31, %s22
      %p33 = scmp.ge.s32.totalorder %s32, 2
      %s34 = scalar_select %p33, 0, %s32
      %s35 = ssub.s32 %s22, %s34
      %s36 = ssub.s32 %s23, %s30
      %s37 = sor.u32 %s35, %s36
      %p38 = scmp.eq.s32.totalorder %s37, 0
      %s40 = sadd.s32 %s39, 1
      %s41 = scalar_select %p38, %s39, %s40
      %p44 = pneg %p38
      %p45 = scmp.eq.s32.totalorder %s15, 1
      %p46 = por %p44, %p45
      %p47 = scmp.ne.s32.totalorder %s39, %s42
      %p48 = scmp.eq.s32.totalorder %s15, 0
      %p49 = por %p47, %p48
      %p50 = scmp.ne.s32.totalorder %s39, %s42
      %p51 = scmp.eq.s32.totalorder %s20, 1
      %p52 = por %p50, %p51
      %p53 = scmp.ne.s32.totalorder %s42, %s43
      %p54 = scmp.eq.s32.totalorder %s20, 0
      %p55 = por %p53, %p54
      %p56 = scmp.ne.s32.totalorder %s42, %s43
      %p57 = scmp.eq.s32.totalorder %s21, 1
      %p58 = por %p56, %p57
      %p60 = scmp.ne.s32.totalorder %s43, %s59
      %p61 = scmp.eq.s32.totalorder %s21, 0
      %p62 = por %p60, %p61
      %s63 = ssub.s32 %s22, %s34
      %p64 = scmp.eq.s32.totalorder %s63, 0
      %s66 = sadd.s32 %s65, 1
      %s67 = scalar_select %p64, %s65, %s66
      %p70 = pneg %p64
      %p71 = scmp.eq.s32.totalorder %s15, 1
      %p72 = por %p70, %p71
      %p73 = scmp.ne.s32.totalorder %s65, %s68
      %p74 = scmp.eq.s32.totalorder %s15, 0
      %p75 = por %p73, %p74
      %p76 = scmp.ne.s32.totalorder %s65, %s68
      %p77 = scmp.eq.s32.totalorder %s20, 1
      %p78 = por %p76, %p77
      %p79 = scmp.ne.s32.totalorder %s68, %s69
      %p80 = scmp.eq.s32.totalorder %s20, 0
      %p81 = por %p79, %p80
      %p82 = scmp.ne.s32.totalorder %s68, %s69
      %p83 = scmp.eq.s32.totalorder %s21, 1
      %p84 = por %p82, %p83
      %p86 = scmp.ne.s32.totalorder %s69, %s85
      %p87 = scmp.eq.s32.totalorder %s21, 0
      %p88 = por %p86, %p87
      %s89 = ssub.s32 %s22, %s34
      %p90 = scmp.eq.s32.totalorder %s89, 0
      %s92 = sadd.s32 %s91, 1
      %s93 = scalar_select %p90, %s91, %s92
      %p96 = pneg %p90
      %p97 = scmp.eq.s32.totalorder %s15, 1
      %p98 = por %p96, %p97
      %p99 = scmp.ne.s32.totalorder %s91, %s94
      %p100 = scmp.eq.s32.totalorder %s15, 0
      %p101 = por %p99, %p100
      %p102 = scmp.ne.s32.totalorder %s91, %s94
      %p103 = scmp.eq.s32.totalorder %s20, 1
      %p104 = por %p102, %p103
      %p105 = scmp.ne.s32.totalorder %s94, %s95
      %p106 = scmp.eq.s32.totalorder %s20, 0
      %p107 = por %p105, %p106
      %p108 = scmp.ne.s32.totalorder %s94, %s95
      %p109 = scmp.eq.s32.totalorder %s21, 1
      %p110 = por %p108, %p109
      %p112 = scmp.ne.s32.totalorder %s95, %s111
      %p113 = scmp.eq.s32.totalorder %s21, 0
      %p114 = por %p112, %p113
      %s115 = ssub.s32 %s22, %s34
      %s116 = ssub.s32 %s23, %s30
      %s117 = sor.u32 %s115, %s116
      %p118 = scmp.eq.s32.totalorder %s117, 0
      %s120 = sadd.s32 %s119, 1
      %s121 = scalar_select %p118, %s119, %s120
      %p124 = pneg %p118
      %p125 = scmp.eq.s32.totalorder %s15, 1
      %p126 = por %p124, %p125
      %p127 = scmp.ne.s32.totalorder %s119, %s122
      %p128 = scmp.eq.s32.totalorder %s15, 0
      %p129 = por %p127, %p128
      %p130 = scmp.ne.s32.totalorder %s119, %s122
      %p131 = scmp.eq.s32.totalorder %s20, 1
      %p132 = por %p130, %p131
      %p133 = scmp.ne.s32.totalorder %s122, %s123
      %p134 = scmp.eq.s32.totalorder %s20, 0
      %p135 = por %p133, %p134
      %p136 = scmp.ne.s32.totalorder %s122, %s123
      %p137 = scmp.eq.s32.totalorder %s21, 1
      %p138 = por %p136, %p137
      %p140 = scmp.ne.s32.totalorder %s123, %s139
      %p141 = scmp.eq.s32.totalorder %s21, 0
      %p142 = por %p140, %p141
      %p143 = scmp.le.s32.totalorder 1, %s15
      %p144 = scmp.lt.s32.totalorder %s15, 3
      %p145 = pnand %p143, %p144
      %p146 = pneg %p145
      // Predicated region
      $region9: #{drifting_loss.1} parent=5 // pred_check
        _
      $region10: #{drifting_loss.1} parent=5 // pred_check_branch
        %148 = sbr.rel (%p145) target = $region12
      $region11: #{drifting_loss.1} parent=5 // pred_region
        %s149 = ssub.s32 %s15, 1
      $region12: #{drifting_loss.1} parent=5 // pred_fallthru
        _
      %p150 = scmp.lt.s32.totalorder %s15, 2
      // Predicated region
      $region13: #{drifting_loss.1} parent=5 // pred_check
        %p151 = pneg %p150
      $region14: #{drifting_loss.1} parent=5 // pred_check_branch
        %153 = sbr.rel (%p151) target = $region16
      $region15: #{drifting_loss.1} parent=5 // pred_region
        // Predicated region
        $region17: #{drifting_loss.1} parent=15 // pred_check
          %p154 = pneg %p49
        $region18: #{drifting_loss.1} parent=15 // pred_check_branch
          %156 = sbr.rel (%p154) target = $region20
        $region19: #{drifting_loss.1} parent=15 // pred_region
          %s157 = sand.u32 %s39, 1
          %s158 = scalar_lea.sflag [#allocation3], %s157
          %s159 = sand.u32 %s39, 1
          %s160 = smul.addr %s159, 8
          %s161 = scalar_lea.vmem [#allocation2], %s160
          %s163 = ssub.s32 128, 128
          %164 = vsyncadd %s158, %s163
          %s165 = sadd.s32 %s23, %s22
          %s166 = smul.addr %s165, 128
          %s167 = scalar_lea.hbm %s0, %s166
          %s169 = sshll.u32 %s161, 4
          %s170 = int_to_ptr.vmem [resolvable:$true] %s169
          %172 = dma.hbm_to_vmem [thread:$0]  %s167, 128, %s170, %s158
        $region20: #{drifting_loss.1} parent=15 // pred_fallthru
          _
        // Predicated region
        $region21: #{drifting_loss.1} parent=15 // pred_check
          %p173 = pneg %p75
        $region22: #{drifting_loss.1} parent=15 // pred_check_branch
          %175 = sbr.rel (%p173) target = $region24
        $region23: #{drifting_loss.1} parent=15 // pred_region
          %s176 = sand.u32 %s65, 1
          %s177 = scalar_lea.sflag [#allocation5], %s176
          %s178 = sand.u32 %s65, 1
          %s179 = smul.addr %s178, 8
          %s180 = scalar_lea.vmem [#allocation4], %s179
          %s182 = ssub.s32 128, 128
          %183 = vsyncadd %s177, %s182
          %s184 = smul.addr %s22, 128
          %s185 = scalar_lea.hbm %s1, %s184
          %s187 = sshll.u32 %s180, 4
          %s188 = int_to_ptr.vmem [resolvable:$true] %s187
          %190 = dma.hbm_to_vmem [thread:$0]  %s185, 128, %s188, %s177
        $region24: #{drifting_loss.1} parent=15 // pred_fallthru
          _
        // Predicated region
        $region25: #{drifting_loss.1} parent=15 // pred_check
          %p191 = pneg %p101
        $region26: #{drifting_loss.1} parent=15 // pred_check_branch
          %193 = sbr.rel (%p191) target = $region28
        $region27: #{drifting_loss.1} parent=15 // pred_region
          %p194 = scmp.lt.s32.totalorder %s22, 1
          %s195 = scalar_select %p194, %s22, 1
          %s196 = scalar_lea.vmem %s2, %s195
        $region28: #{drifting_loss.1} parent=15 // pred_fallthru
          _
      $region16: #{drifting_loss.1} parent=5 // pred_fallthru
        _
      %p197 = scmp.le.s32.totalorder 1, %s15
      %p198 = scmp.lt.s32.totalorder %s15, 3
      %p199 = pnand %p197, %p198
      %p200 = pneg %p199
      // Predicated region
      $region29: #{drifting_loss.1} parent=5 // pred_check
        _
      $region30: #{drifting_loss.1} parent=5 // pred_check_branch
        %202 = sbr.rel (%p199) target = $region32
      $region31: #{drifting_loss.1} parent=5 // pred_region
        %s203 = ssub.s32 %s15, 1
        %s204 = sand.u32 %s42, 1
        %s205 = scalar_lea.sflag [#allocation3], %s204
        %s206 = sand.u32 %s42, 1
        %s207 = smul.addr %s206, 8
        %s208 = scalar_lea.vmem [#allocation2], %s207
        // Predicated region
        $region33: #{drifting_loss.1} parent=31 // pred_check
          %p209 = pneg %p55
        $region34: #{drifting_loss.1} parent=31 // pred_check_branch
          %211 = sbr.rel (%p209) target = $region36
        $region35: #{drifting_loss.1} parent=31 // pred_region
          %212 = dma.done %s205, 128
        $region36: #{drifting_loss.1} parent=31 // pred_fallthru
          _
        %s213 = sand.u32 %s68, 1
        %s214 = scalar_lea.sflag [#allocation5], %s213
        %s215 = sand.u32 %s68, 1
        %s216 = smul.addr %s215, 8
        %s217 = scalar_lea.vmem [#allocation4], %s216
        // Predicated region
        $region37: #{drifting_loss.1} parent=31 // pred_check
          %p218 = pneg %p81
        $region38: #{drifting_loss.1} parent=31 // pred_check_branch
          %220 = sbr.rel (%p218) target = $region40
        $region39: #{drifting_loss.1} parent=31 // pred_region
          %221 = dma.done %s214, 128
        $region40: #{drifting_loss.1} parent=31 // pred_fallthru
          _
        %s222 = sand.u32 %s42, 1
        %s223 = scalar_lea.sflag [#allocation3], %s222
        %s224 = sand.u32 %s42, 1
        %s225 = smul.addr %s224, 8
        %s226 = scalar_lea.vmem [#allocation2], %s225
        %p227 = pneg %p55
        %p228 = pneg %p52
        %s229 = sand.u32 %s68, 1
        %s230 = scalar_lea.sflag [#allocation5], %s229
        %s231 = sand.u32 %s68, 1
        %s232 = smul.addr %s231, 8
        %s233 = scalar_lea.vmem [#allocation4], %s232
        %p234 = pneg %p81
        %p235 = pneg %p78
        %p236 = scmp.lt.s32.totalorder %s24, 1
        %s237 = scalar_select %p236, %s24, 1
        %s238 = scalar_lea.vmem %s2, %s237
        %p239 = pneg %p107
        %p240 = pneg %p104
        %p241 = pneg %p135
        %p242 = pneg %p132
        %p243 = scmp.lt.s32.totalorder %s24, 1
        %s244 = scalar_select %p243, %s24, 1
        %p245 = scmp.lt.s32.totalorder %s25, 0
        %s246 = scalar_select %p245, %s25, 0
        %s247 = sadd.s32 %s246, %s244
        %s248 = smul.addr %s247, 8
        %s249 = scalar_lea.vmem %s3, %s248
        %p250 = scmp.lt.s32.totalorder %s24, 1
        %s251 = scalar_select %p250, %s24, 1
        %s252 = scalar_lea.vmem %s2, %s251
        %p253 = scmp.lt.s32.totalorder %s24, 1
        %s254 = scalar_select %p253, %s24, 1
        %p255 = scmp.lt.s32.totalorder %s25, 0
        %s256 = scalar_select %p255, %s25, 0
        %s257 = sadd.s32 %s256, %s254
        %s258 = smul.addr %s257, 8
        %s259 = scalar_lea.vmem %s3, %s258
        %v261 = vld [vmem:[%s252] sm:$0x1]
        %v262 = vunpack.c.0.s8 %v261
        %v263 = vcvt.s32.f32 %v262
        %v264 = vld [vmem:[%s208] sm:$0xff]
        %v265 = vlaneseq
        %v266 = vshrl.u32 %v265, 7
        %v267 = vsub.s32 0, %v266
        %v268 = vrot.slane %v263, %v267
        %v269 = vmul.f32 %v264, %v268
        %v270 = vmul.f32 %v269, %v269
        %vm271 = vcmask 261120
        %v272 = vsel %vm271, %v270, 0.0
        %273 = vadd.xlane.f32.xlu0 %v272
        %v274 = vpop.xlane.xlu0 %273
        %v275 = vmax.f32 %v274, 1e-16
        %v276 = vrsqrt.pop %v275
        %v277 = vmul.f32 %v269, %v276
        %v278 = vpack.c.bf16 %v277, %v277
        %v279 = vld [vmem:[%s217] sm:$0xff]
        %v280 = vmul.f32 %v279, %v268
        %v281 = vmul.f32 %v280, %v280
        %v282 = vsel %vm271, %v281, 0.0
        %283 = vadd.xlane.f32.xlu0 %v282
        %v284 = vpop.xlane.xlu0 %283
        %v285 = vmax.f32 %v284, 1e-16
        %v286 = vrsqrt.pop %v285
        %v287 = vmul.f32 %v280, %v286
        %v288 = vpack.c.bf16 %v287, %v287
        %v290 = vsel %vm271, %v278, 0
        %v293 = vsel %vm271, %v288, 0
        %295 = vmatprep.subr.bf16.mxu0 0
        %296 = vmatpush1.bf16.xpose.msra.mxu0 %v293
        %297 = vmatprep.subr.bf16.mxu0 0
        %298 = vmatpush1.bf16.xpose.msra.mxu0 0
        %299 = vmatprep.subr.bf16.mxu0 0
        %300 = vmatpush1.bf16.xpose.msra.mxu0 0
        %301 = vmatprep.subr.bf16.mxu0 0
        %302 = vmatpush1.bf16.xpose.msra.mxu0 0
        %303 = vmatprep.subr.bf16.mxu0 0
        %304 = vmatpush1.bf16.xpose.msra.mxu0 0
        %305 = vmatprep.subr.bf16.mxu0 0
        %306 = vmatpush1.bf16.xpose.msra.mxu0 0
        %307 = vmatprep.subr.bf16.mxu0 0
        %308 = vmatpush1.bf16.xpose.msra.mxu0 0
        %309 = vmatprep.subr.bf16.mxu0 0
        %310 = vmatpush1.bf16.xpose.msra.mxu0 0
        %311 = vmatprep.subr.bf16.mxu0 0
        %312 = vmatpush1.bf16.xpose.msra.mxu0 0
        %313 = vmatprep.subr.bf16.mxu0 0
        %314 = vmatpush1.bf16.xpose.msra.mxu0 0
        %315 = vmatprep.subr.bf16.mxu0 0
        %316 = vmatpush1.bf16.xpose.msra.mxu0 0
        %317 = vmatprep.subr.bf16.mxu0 0
        %318 = vmatpush1.bf16.xpose.msra.mxu0 0
        %319 = vmatprep.subr.bf16.mxu0 0
        %320 = vmatpush1.bf16.xpose.msra.mxu0 0
        %321 = vmatprep.subr.bf16.mxu0 0
        %322 = vmatpush1.bf16.xpose.msra.mxu0 0
        %323 = vmatprep.subr.bf16.mxu0 0
        %324 = vmatpush1.bf16.xpose.msra.mxu0 0
        %325 = vmatprep.subr.bf16.mxu0 0
        %326 = vmatpush1.bf16.xpose.msra.mxu0 0
        %327 = vmatprep.mubr.bf16.mxu0 0
        %328 = vmatmul.mubr.bf16.gmra.mrb[0].mxu0 %v290
        %v329 = vpop.f32.mrb[0].mxu0
        %v330 = vadd.f32 0.0, %v329
        %v331 = vpop.f32.mrb[0].mxu0
        %v332 = vpop.f32.mrb[0].mxu0
        %v333 = vpop.f32.mrb[0].mxu0
        %334 = vdwg.mxu0
        %s335 = smul.u32 %s25, 8
        %v336 = vlaneseq
        %v337 = vshrl.u32 %v336, 7
        %v338 = vstv %s335
        %v339 = vadd.s32 %v338, %v337
        %v340 = vlaneseq
        %v341 = vand.u32 %v340, 127
        %vm342 = vcmp.gt.s32.totalorder %v341, %v339
        %vm343 = vcmp.lt.s32.totalorder %v341, 8
        %vm344 = vmand %vm342, %vm343
        %vm345 = vcmp.lt.s32.totalorder %v339, 8
        %vm346 = vmand %vm344, %vm345
        %v347 = vsel %vm346, %v330, 0.0
        %vm348 = vcmask 64512
        %v349 = vsel %vm348, %v347, 0.0
        %350 = vadd.xlane.f32.xlu0 %v349
        %v351 = vpop.xlane.xlu0 %350
        %v352 = vrot.slane %v351, 4
        %v353 = vadd.f32 %v351, %v352
        %v354 = vrot.slane %v353, 2
        %v355 = vadd.f32 %v353, %v354
        %v356 = vrot.slane %v355, 1
        %v357 = vadd.f32 %v355, %v356
        %358 = vst [vmem:[%s259] sm:$0xff] %v357
        %p359 = scmp.lt.s32.totalorder %s24, 1
        %s360 = scalar_select %p359, %s24, 1
        %p361 = scmp.lt.s32.totalorder %s25, 0
        %s362 = scalar_select %p361, %s25, 0
        %s363 = sadd.s32 %s362, %s360
        %s364 = smul.addr %s363, 8
        %s365 = scalar_lea.vmem %s3, %s364
        // Predicated region
        $region41: #{drifting_loss.1} parent=31 // pred_check
          %p366 = pneg %p132
        $region42: #{drifting_loss.1} parent=31 // pred_check_branch
          %368 = sbr.rel (%p366) target = $region44
        $region43: #{drifting_loss.1} parent=31 // pred_region
          _
        $region44: #{drifting_loss.1} parent=31 // pred_fallthru
          _
      $region32: #{drifting_loss.1} parent=5 // pred_fallthru
        _
      %p369 = scmp.le.s32.totalorder 2, %s15
      // Predicated region
      $region45: #{drifting_loss.1} parent=5 // pred_check
        %p370 = pneg %p369
      $region46: #{drifting_loss.1} parent=5 // pred_check_branch
        %372 = sbr.rel (%p370) target = $region48
      $region47: #{drifting_loss.1} parent=5 // pred_region
        %s373 = ssub.s32 %s15, 2
        // Predicated region
        $region49: #{drifting_loss.1} parent=47 // pred_check
          %p374 = pneg %p138
        $region50: #{drifting_loss.1} parent=47 // pred_check_branch
          %376 = sbr.rel (%p374) target = $region52
        $region51: #{drifting_loss.1} parent=47 // pred_region
          %p377 = scmp.lt.s32.totalorder %s26, 1
          %s378 = scalar_select %p377, %s26, 1
          %p379 = scmp.lt.s32.totalorder %s27, 0
          %s380 = scalar_select %p379, %s27, 0
          %s381 = sadd.s32 %s380, %s378
          %s382 = smul.addr %s381, 8
          %s383 = scalar_lea.vmem %s3, %s382
        $region52: #{drifting_loss.1} parent=47 // pred_fallthru
          _
      $region48: #{drifting_loss.1} parent=5 // pred_fallthru
        _
    $region6: #{drifting_loss.1} parent=1 // loop_footer
      %s19 = sadd.s32 1, %s15
    $region7: #{drifting_loss.1} parent=1 // loop_footer_branch
      %14 = sbr.rel target = $region3
    $region8: #{drifting_loss.1} parent=1 // loop_exit
      _
    %384 = vsyncpa [#allocation3], 1
    %s385 = scalar_lea.sflag [#allocation3], 1
    %386 = vsyncpa %s385, 1
    %387 = vsyncpa [#allocation5], 1
    %s388 = scalar_lea.sflag [#allocation5], 1
    %389 = vsyncpa %s388, 1

</llo_original>
